<compile_context>
chip_gen: v7x
topology: tpu7x:2x2x1
jax: 0.10.0
libtpu: 0.0.40
codegen_flags: <defaults>
</compile_context>

<pallas_src>
import functools

import jax
import jax.numpy as jnp
from jax.experimental import pallas as pl
from jax.experimental.pallas import tpu as pltpu


C_PAD = 128  # lane-dense output width (real class_num columns sliced in wrapper)


def embedding_kernel(x_ref, len_ref, table_ref, w_ref, b_ref, out_ref, *, vchunk):
    x = x_ref[...]                                   # (bn, T) int32
    bn, seq_len = x.shape
    vp, w_dim = table_ref.shape
    num_chunks = vp // vchunk

    # Chunk- and grid-invariant lane iota (1, vchunk); broadcast in the compare.
    lane_iota = jax.lax.broadcasted_iota(jnp.int32, (1, vchunk), 1)

    def chunk_body(c, acc):
        base = pl.multiple_of(c * vchunk, vchunk)
        tab = table_ref[pl.ds(base, vchunk), :]      # (vchunk, W) f32, VMEM resident
        # Offset the ids (touches only T lanes) instead of offsetting the iota.
        x_loc = x - c * vchunk                       # (bn, T)
        counts = jnp.zeros((bn, vchunk), jnp.float32)
        for t in range(seq_len):                     # T small & static -> unrolled
            counts += (x_loc[:, t:t + 1] == lane_iota).astype(jnp.float32)
        # Partial embedding sum for this vocab chunk (counts are exact ints).
        return acc + jnp.dot(counts, tab, preferred_element_type=jnp.float32)

    acc = jax.lax.fori_loop(0, num_chunks, chunk_body,
                            jnp.zeros((bn, w_dim), jnp.float32))

    # Mean pool: exact f32 divide (lengths are per-row scalars, cost is noise).
    pooled = acc / len_ref[...]                      # (bn, W)
    # Linear(W -> C_PAD) + sigmoid, lane-dense store.
    logits = jnp.dot(pooled, w_ref[...],
                     preferred_element_type=jnp.float32) + b_ref[...]
    out_ref[...] = jax.nn.sigmoid(logits)


def _round_up(a, b):
    return (a + b - 1) // b * b


def embedding_forward(x, length, table, lin_w, lin_b, *, block_n=128, vchunk=128):
    """x:(N,T) int, length:(N,), table:(V,W) f32, lin_w:(W,C) f32, lin_b:(1,C) f32."""
    N, T = x.shape
    V, W = table.shape
    C = lin_w.shape[1]

    # --- batch tile: sublane aligned; >= 2 tiles when N > 8 (v7x megacore) ----
    n_al = _round_up(N, 8)
    if N > 8:
        block_n = min(block_n, _round_up(max(8, n_al // 2), 8))
    block_n = _round_up(max(8, min(block_n, n_al)), 8)
    Np = _round_up(N, block_n)

    # --- vocab chunking (in-kernel loop; table stays fully VMEM resident) -----
    vchunk = max(128, _round_up(vchunk, 128))
    Vp = _round_up(V, vchunk)

    # --- pad / lay out operands ------------------------------------------------
    x_p = jnp.zeros((Np, T), jnp.int32).at[:N].set(x.astype(jnp.int32))
    # padded batch rows get length 1 so the (discarded) rows never divide by 0
    len_p = jnp.ones((Np, 1), jnp.float32).at[:N, 0].set(length.astype(jnp.float32))
    table_p = jnp.zeros((Vp, W), jnp.float32).at[:V].set(table.astype(jnp.float32))
    w_p = jnp.zeros((W, C_PAD), jnp.float32).at[:, :C].set(lin_w.astype(jnp.float32))
    b_p = jnp.zeros((1, C_PAD), jnp.float32).at[:, :C].set(
        lin_b.reshape(1, C).astype(jnp.float32))

    # --- VMEM budget: only raise the scoped limit if the resident table needs it
    resident_bytes = Vp * W * 4 + W * C_PAD * 4 + C_PAD * 4
    stream_bytes = 2 * (block_n * T * 4 + block_n * 4 + block_n * C_PAD * 4)
    vmem_est = 2 * resident_bytes + stream_bytes + (2 << 20)
    vmem_limit = None
    if vmem_est > (16 << 20):                 # above v5e scoped default
        vmem_limit = int(min(vmem_est, 40 << 20))   # stay under v7x 64 MiB physical

    grid = (Np // block_n,)                   # 1-D grid over batch tiles only

    out = pl.pallas_call(
        functools.partial(embedding_kernel, vchunk=vchunk),
        out_shape=jax.ShapeDtypeStruct((Np, C_PAD), jnp.float32),
        grid_spec=pltpu.PrefetchScalarGridSpec(
            num_scalar_prefetch=0,
            grid=grid,
            in_specs=[
                pl.BlockSpec((block_n, T), lambda i: (i, 0)),   # token ids
                pl.BlockSpec((block_n, 1), lambda i: (i, 0)),   # lengths
                pl.BlockSpec((Vp, W), lambda i: (0, 0)),        # table (resident)
                pl.BlockSpec((W, C_PAD), lambda i: (0, 0)),     # lin_w (resident)
                pl.BlockSpec((1, C_PAD), lambda i: (0, 0)),     # lin_b (resident)
            ],
            out_specs=pl.BlockSpec((block_n, C_PAD), lambda i: (i, 0)),
        ),
        compiler_params=pltpu.CompilerParams(
            dimension_semantics=("parallel",),
            vmem_limit_bytes=vmem_limit,
        ),
    )(x_p, len_p, table_p, w_p, b_p)

    return out[:N, :C]


if __name__ == "__main__":
    # small shapes consistent with the module
    N = 8      # batch
    T = 8      # sentence_len
    V = 512    # input_dim (vocab size) -> exercises the in-kernel vocab chunk loop
    W = 128    # word_vec_dim
    C = 2      # class_num

    key = jax.random.PRNGKey(0)
    k_tab, k_w, k_b, k_x, k_len = jax.random.split(key, 5)

    # deterministic parameters (nn.Embedding ~ N(0,1), row 0 zeroed: padding_idx=0)
    table = jax.random.normal(k_tab, (V, W), dtype=jnp.float32)
    table = table.at[0].set(0.0)
    # nn.Linear(W, C): torch weight (C, W), bias (C,) -> stored transposed for x @ w
    lin_w = (jax.random.uniform(k_w, (C, W), dtype=jnp.float32,
                                minval=-1.0, maxval=1.0) / jnp.sqrt(W)).T     # (W, C)
    lin_b = (jax.random.uniform(k_b, (1, C), dtype=jnp.float32,
                                minval=-1.0, maxval=1.0) / jnp.sqrt(W))       # (1, C)

    # deterministic inputs: token ids (0 = padding) and sentence lengths >= 3
    lengths = jax.random.randint(k_len, (N,), minval=3, maxval=T + 1)         # (N,)
    tok = jax.random.randint(k_x, (N, T), minval=1, maxval=V)                 # (N, T)
    pos = jnp.arange(T)[None, :]
    x = jnp.where(pos < lengths[:, None], tok, 0).astype(jnp.int32)

    out = embedding_forward(x, lengths, table, lin_w, lin_b)
    out = jax.block_until_ready(out)
    assert out.shape == (N, C)

    # pure-JAX f32 reference (table kept f32 end-to-end in the kernel now).
    # Tolerance covers the MXU's default reduced-precision handling of f32
    # matmul operands (both in the kernel and in the reference's own dot).
    embed_word = table[x]                                                     # (N, T, W)
    ref = embed_word.sum(axis=1) / lengths[:, None].astype(jnp.float32)
    ref = jax.nn.sigmoid(ref @ lin_w + lin_b)

    max_err = float(jnp.max(jnp.abs(out - ref)))
    assert jnp.allclose(out, ref, atol=2e-2, rtol=2e-2), f"mismatch, max_err={max_err}"

    print("KERNEL_OK")
</pallas_src>

<mosaic_0001>
module attributes {stable_mosaic.version = 11 : i64} {
  func.func @embedding_kernel(%arg0: i32, %arg1: memref<8x8xi32, #tpu.memory_space<vmem>>, %arg2: memref<8x1xf32, #tpu.memory_space<vmem>>, %arg3: memref<512x128xf32, #tpu.memory_space<vmem>>, %arg4: memref<128x128xf32, #tpu.memory_space<vmem>>, %arg5: memref<1x128xf32, #tpu.memory_space<vmem>>, %arg6: memref<8x128xf32, #tpu.memory_space<vmem>>) attributes {dimension_semantics = [#tpu.dimension_semantics<parallel>], iteration_bounds = array<i64: 1>, scalar_prefetch = 0 : i64, scratch_operands = 0 : i64, tpu.core_type = #tpu.core_type<tc>, window_params = [{transform_indices = @transform_0, window_bounds = array<i64: 8, 8>}, {transform_indices = @transform_1, window_bounds = array<i64: 8, 1>}, {pipeline_mode = #tpu.pipeline_mode<synchronous>, transform_indices = @transform_2, window_bounds = array<i64: 512, 128>}, {pipeline_mode = #tpu.pipeline_mode<synchronous>, transform_indices = @transform_3, window_bounds = array<i64: 128, 128>}, {pipeline_mode = #tpu.pipeline_mode<synchronous>, transform_indices = @transform_4, window_bounds = array<i64: 1, 128>}, {transform_indices = @transform_5, window_bounds = array<i64: 8, 128>}]} {
    %c0 = arith.constant 0 : index
    %c0_0 = arith.constant 0 : index
    %0 = vector.load %arg1[%c0, %c0_0] : memref<8x8xi32, #tpu.memory_space<vmem>>, vector<8x8xi32>
    %1 = tpu.iota {dimensions = array<i32: 1>} : vector<1x128xi32>
    %cst = arith.constant 0.000000e+00 : f32
    %2 = vector.broadcast %cst : f32 to vector<8x128xf32>
    %c0_i32 = arith.constant 0 : i32
    %c4_i32 = arith.constant 4 : i32
    %3 = arith.addi %c0_i32, %c4_i32 : i32
    %c1_i32 = arith.constant 1 : i32
    %4 = scf.for %arg7 = %c0_i32 to %3 step %c1_i32 iter_args(%arg8 = %2) -> (vector<8x128xf32>)  : i32 {
      %c128_i32 = arith.constant 128 : i32
      %19 = arith.muli %arg7, %c128_i32 : i32
      %20 = tpu.assume_multiple %19, 128 : i32
      %21 = arith.index_cast %20 : i32 to index
      %c0_12 = arith.constant 0 : index
      %22 = vector.load %arg3[%21, %c0_12] : memref<512x128xf32, #tpu.memory_space<vmem>>, vector<128x128xf32>
      %c128_i32_13 = arith.constant 128 : i32
      %23 = arith.muli %arg7, %c128_i32_13 : i32
      %24 = vector.broadcast %23 : i32 to vector<8x8xi32>
      %25 = arith.subi %0, %24 : vector<8x8xi32>
      %cst_14 = arith.constant 0.000000e+00 : f32
      %26 = vector.broadcast %cst_14 : f32 to vector<8x128xf32>
      %27 = vector.extract_strided_slice %25 {offsets = [0, 0], sizes = [8, 1], strides = [1, 1]} : vector<8x8xi32> to vector<8x1xi32>
      %28 = vector.broadcast %27 : vector<8x1xi32> to vector<8x128xi32>
      %29 = vector.broadcast %1 : vector<1x128xi32> to vector<8x128xi32>
      %30 = arith.cmpi eq, %28, %29 : vector<8x128xi32>
      %31 = arith.extui %30 : vector<8x128xi1> to vector<8x128xi32>
      %32 = arith.sitofp %31 : vector<8x128xi32> to vector<8x128xf32>
      %33 = arith.addf %26, %32 : vector<8x128xf32>
      %34 = vector.extract_strided_slice %25 {offsets = [0, 1], sizes = [8, 1], strides = [1, 1]} : vector<8x8xi32> to vector<8x1xi32>
      %35 = vector.broadcast %34 : vector<8x1xi32> to vector<8x128xi32>
      %36 = vector.broadcast %1 : vector<1x128xi32> to vector<8x128xi32>
      %37 = arith.cmpi eq, %35, %36 : vector<8x128xi32>
      %38 = arith.extui %37 : vector<8x128xi1> to vector<8x128xi32>
      %39 = arith.sitofp %38 : vector<8x128xi32> to vector<8x128xf32>
      %40 = arith.addf %33, %39 : vector<8x128xf32>
      %41 = vector.extract_strided_slice %25 {offsets = [0, 2], sizes = [8, 1], strides = [1, 1]} : vector<8x8xi32> to vector<8x1xi32>
      %42 = vector.broadcast %41 : vector<8x1xi32> to vector<8x128xi32>
      %43 = vector.broadcast %1 : vector<1x128xi32> to vector<8x128xi32>
      %44 = arith.cmpi eq, %42, %43 : vector<8x128xi32>
      %45 = arith.extui %44 : vector<8x128xi1> to vector<8x128xi32>
      %46 = arith.sitofp %45 : vector<8x128xi32> to vector<8x128xf32>
      %47 = arith.addf %40, %46 : vector<8x128xf32>
      %48 = vector.extract_strided_slice %25 {offsets = [0, 3], sizes = [8, 1], strides = [1, 1]} : vector<8x8xi32> to vector<8x1xi32>
      %49 = vector.broadcast %48 : vector<8x1xi32> to vector<8x128xi32>
      %50 = vector.broadcast %1 : vector<1x128xi32> to vector<8x128xi32>
      %51 = arith.cmpi eq, %49, %50 : vector<8x128xi32>
      %52 = arith.extui %51 : vector<8x128xi1> to vector<8x128xi32>
      %53 = arith.sitofp %52 : vector<8x128xi32> to vector<8x128xf32>
      %54 = arith.addf %47, %53 : vector<8x128xf32>
      %55 = vector.extract_strided_slice %25 {offsets = [0, 4], sizes = [8, 1], strides = [1, 1]} : vector<8x8xi32> to vector<8x1xi32>
      %56 = vector.broadcast %55 : vector<8x1xi32> to vector<8x128xi32>
      %57 = vector.broadcast %1 : vector<1x128xi32> to vector<8x128xi32>
      %58 = arith.cmpi eq, %56, %57 : vector<8x128xi32>
      %59 = arith.extui %58 : vector<8x128xi1> to vector<8x128xi32>
      %60 = arith.sitofp %59 : vector<8x128xi32> to vector<8x128xf32>
      %61 = arith.addf %54, %60 : vector<8x128xf32>
      %62 = vector.extract_strided_slice %25 {offsets = [0, 5], sizes = [8, 1], strides = [1, 1]} : vector<8x8xi32> to vector<8x1xi32>
      %63 = vector.broadcast %62 : vector<8x1xi32> to vector<8x128xi32>
      %64 = vector.broadcast %1 : vector<1x128xi32> to vector<8x128xi32>
      %65 = arith.cmpi eq, %63, %64 : vector<8x128xi32>
      %66 = arith.extui %65 : vector<8x128xi1> to vector<8x128xi32>
      %67 = arith.sitofp %66 : vector<8x128xi32> to vector<8x128xf32>
      %68 = arith.addf %61, %67 : vector<8x128xf32>
      %69 = vector.extract_strided_slice %25 {offsets = [0, 6], sizes = [8, 1], strides = [1, 1]} : vector<8x8xi32> to vector<8x1xi32>
      %70 = vector.broadcast %69 : vector<8x1xi32> to vector<8x128xi32>
      %71 = vector.broadcast %1 : vector<1x128xi32> to vector<8x128xi32>
      %72 = arith.cmpi eq, %70, %71 : vector<8x128xi32>
      %73 = arith.extui %72 : vector<8x128xi1> to vector<8x128xi32>
      %74 = arith.sitofp %73 : vector<8x128xi32> to vector<8x128xf32>
      %75 = arith.addf %68, %74 : vector<8x128xf32>
      %76 = vector.extract_strided_slice %25 {offsets = [0, 7], sizes = [8, 1], strides = [1, 1]} : vector<8x8xi32> to vector<8x1xi32>
      %77 = vector.broadcast %76 : vector<8x1xi32> to vector<8x128xi32>
      %78 = vector.broadcast %1 : vector<1x128xi32> to vector<8x128xi32>
      %79 = arith.cmpi eq, %77, %78 : vector<8x128xi32>
      %80 = arith.extui %79 : vector<8x128xi1> to vector<8x128xi32>
      %81 = arith.sitofp %80 : vector<8x128xi32> to vector<8x128xf32>
      %82 = arith.addf %75, %81 : vector<8x128xf32>
      %cst_15 = arith.constant dense<0.000000e+00> : vector<8x128xf32>
      %83 = tpu.matmul %82, %22, %cst_15 {dimension_numbers = #tpu.dot_dimension_numbers<[1], [0], [0], [1], [0, 0, 1, 1], [], []>} : vector<8x128xf32>, vector<128x128xf32>, vector<8x128xf32> -> vector<8x128xf32>
      %84 = arith.addf %arg8, %83 : vector<8x128xf32>
      scf.yield %84 : vector<8x128xf32>
    }
    %c4_i32_1 = arith.constant 4 : i32
    %c0_2 = arith.constant 0 : index
    %c0_3 = arith.constant 0 : index
    %5 = vector.load %arg2[%c0_2, %c0_3] : memref<8x1xf32, #tpu.memory_space<vmem>>, vector<8x1xf32>
    %6 = vector.broadcast %5 : vector<8x1xf32> to vector<8x128xf32>
    %7 = arith.divf %4, %6 : vector<8x128xf32>
    %c0_4 = arith.constant 0 : index
    %c0_5 = arith.constant 0 : index
    %8 = vector.load %arg4[%c0_4, %c0_5] : memref<128x128xf32, #tpu.memory_space<vmem>>, vector<128x128xf32>
    %cst_6 = arith.constant dense<0.000000e+00> : vector<8x128xf32>
    %9 = tpu.matmul %7, %8, %cst_6 {dimension_numbers = #tpu.dot_dimension_numbers<[1], [0], [0], [1], [0, 0, 1, 1], [], []>} : vector<8x128xf32>, vector<128x128xf32>, vector<8x128xf32> -> vector<8x128xf32>
    %c0_7 = arith.constant 0 : index
    %c0_8 = arith.constant 0 : index
    %10 = vector.load %arg5[%c0_7, %c0_8] : memref<1x128xf32, #tpu.memory_space<vmem>>, vector<1x128xf32>
    %11 = vector.broadcast %10 : vector<1x128xf32> to vector<8x128xf32>
    %12 = arith.addf %9, %11 : vector<8x128xf32>
    %13 = arith.negf %12 : vector<8x128xf32>
    %14 = math.exp %13 : vector<8x128xf32>
    %cst_9 = arith.constant 1.000000e+00 : f32
    %15 = vector.broadcast %cst_9 : f32 to vector<8x128xf32>
    %16 = arith.addf %15, %14 : vector<8x128xf32>
    %17 = arith.divf %15, %16 : vector<8x128xf32>
    %c0_10 = arith.constant 0 : index
    %c0_11 = arith.constant 0 : index
    %18 = vector.load %arg6[%c0_10, %c0_11] : memref<8x128xf32, #tpu.memory_space<vmem>>, vector<8x128xf32>
    tpu.vector_store %arg6[%c0_10, %c0_11], %17 {strides = array<i32>} : memref<8x128xf32, #tpu.memory_space<vmem>>, vector<8x128xf32>,
    return
  }
  func.func @transform_0(%arg0: i32) -> (i32, i32) {
    %c0_i32 = arith.constant 0 : i32
    %c0_i32_0 = arith.constant 0 : i32
    return %arg0, %c0_i32 : i32, i32
  }
  func.func @transform_1(%arg0: i32) -> (i32, i32) {
    %c0_i32 = arith.constant 0 : i32
    %c0_i32_0 = arith.constant 0 : i32
    return %arg0, %c0_i32 : i32, i32
  }
  func.func @transform_2(%arg0: i32) -> (i32, i32) {
    %c0_i32 = arith.constant 0 : i32
    %c0_i32_0 = arith.constant 0 : i32
    %c0_i32_1 = arith.constant 0 : i32
    return %c0_i32, %c0_i32_0 : i32, i32
  }
  func.func @transform_3(%arg0: i32) -> (i32, i32) {
    %c0_i32 = arith.constant 0 : i32
    %c0_i32_0 = arith.constant 0 : i32
    %c0_i32_1 = arith.constant 0 : i32
    return %c0_i32, %c0_i32_0 : i32, i32
  }
  func.func @transform_4(%arg0: i32) -> (i32, i32) {
    %c0_i32 = arith.constant 0 : i32
    %c0_i32_0 = arith.constant 0 : i32
    %c0_i32_1 = arith.constant 0 : i32
    return %c0_i32, %c0_i32_0 : i32, i32
  }
  func.func @transform_5(%arg0: i32) -> (i32, i32) {
    %c0_i32 = arith.constant 0 : i32
    %c0_i32_0 = arith.constant 0 : i32
    return %arg0, %c0_i32 : i32, i32
  }
}

</mosaic_0001>

<llo_original>
// kernel: tpu_custom_call.1
$region0: #{tpu_custom_call.1}
  #allocation0 [shape = 'u32[]', space=smem, size = 0x4, offset = 0x4, fixed_abs, tag = 'smem constant byte address 0x4 - core index']
  #allocation1 [shape = 'u32[144,128]{1,0:T(1,128)}', space=vmem, size = 0x12000, scoped, tag = 'internal scratch']
  %s0 = inlined_call_operand.vmem [shape: s32[8,8], index: 0, kind: input, shape index: {}]
  %s1 = inlined_call_operand.vmem [shape: f32[8,1], index: 1, kind: input, shape index: {}]
  %s2 = inlined_call_operand.hbm [shape: f32[512,128], index: 2, kind: input, shape index: {}]
  %s3 = inlined_call_operand.hbm [shape: f32[128,128], index: 3, kind: input, shape index: {}]
  %s4 = inlined_call_operand.vmem [shape: f32[1,128], index: 4, kind: input, shape index: {}]
  %s5 = inlined_call_operand.hbm [shape: f32[8,128], index: 5, kind: output, shape index: {}]
  %s6 = sld [smem:[#allocation0]]
  $region45: #{tpu_custom_call.1} parent=0
    _
  %s8 = ssub.s32 1, %s6
  %s9 = scalar_select 0, %s8, %s6
  $region1: #{tpu_custom_call.1} parent=0
    #allocation2 [shape = 'u8[262144]{0}', space=vmem, size = 0x40000, scoped, tag = 'input window, operand 2, single buffered']
    #allocation3 [shape = 's32[1]{0}', space=sflag, size = 0x4, scoped, tag = 'scoped memory for tpu_custom_call.1']
    #allocation4 [shape = 's32[1]{0}', space=sflag, size = 0x4, scoped, tag = 'scoped memory for tpu_custom_call.1']
    #allocation5 [shape = 'u8[65536]{0}', space=vmem, size = 0x10000, scoped, tag = 'input window, operand 3, single buffered']
    #allocation6 [shape = 's32[1]{0}', space=sflag, size = 0x4, scoped, tag = 'scoped memory for tpu_custom_call.1']
    #allocation7 [shape = 'u8[4096]{0}', space=vmem, size = 0x1000, scoped, tag = 'output window, operand 0, single buffered']
    %10 = vsyncpa [#allocation3], 0
    %11 = vsyncpa [#allocation6], 0
    %12 = vsyncpa [#allocation4], 0
    // Predicated region
    $region2: #{tpu_custom_call.1} parent=1 // pred_check
      _
    $region3: #{tpu_custom_call.1} parent=1 // pred_check_branch
      %14 = sbr.rel (0) target = $region5
    $region4: #{tpu_custom_call.1} parent=1 // pred_region
      _
    $region5: #{tpu_custom_call.1} parent=1 // pred_fallthru
      _
    // Predicated region
    $region6: #{tpu_custom_call.1} parent=1 // pred_check
      _
    $region7: #{tpu_custom_call.1} parent=1 // pred_check_branch
      %16 = sbr.rel (0) target = $region9
    $region8: #{tpu_custom_call.1} parent=1 // pred_region
      _
    $region9: #{tpu_custom_call.1} parent=1 // pred_fallthru
      _
    // Predicated region
    $region10: #{tpu_custom_call.1} parent=1 // pred_check
      _
    $region11: #{tpu_custom_call.1} parent=1 // pred_check_branch
      %18 = sbr.rel (0) target = $region13
    $region12: #{tpu_custom_call.1} parent=1 // pred_region
      %s20 = ssub.s32 8192, 8192
      %21 = vsyncadd [#allocation3], %s20
      %s22 = sshll.u32 [#allocation2], 4
      %s23 = int_to_ptr.vmem [resolvable:$true] %s22
      %28 = dma.hbm_to_vmem [thread:$0]  %s2, 8192, %s23, [#allocation3], 128, 128, 8
    $region13: #{tpu_custom_call.1} parent=1 // pred_fallthru
      _
    // Predicated region
    $region14: #{tpu_custom_call.1} parent=1 // pred_check
      _
    $region15: #{tpu_custom_call.1} parent=1 // pred_check_branch
      %30 = sbr.rel (0) target = $region17
    $region16: #{tpu_custom_call.1} parent=1 // pred_region
      %s32 = ssub.s32 2048, 2048
      %33 = vsyncadd [#allocation6], %s32
      %s34 = sshll.u32 [#allocation5], 4
      %s35 = int_to_ptr.vmem [resolvable:$true] %s34
      %40 = dma.hbm_to_vmem [thread:$0]  %s3, 2048, %s35, [#allocation6], 128, 128, 8
    $region17: #{tpu_custom_call.1} parent=1 // pred_fallthru
      _
    // Predicated region
    $region18: #{tpu_custom_call.1} parent=1 // pred_check
      _
    $region19: #{tpu_custom_call.1} parent=1 // pred_check_branch
      %42 = sbr.rel (0) target = $region21
    $region20: #{tpu_custom_call.1} parent=1 // pred_region
      _
    $region21: #{tpu_custom_call.1} parent=1 // pred_fallthru
      _
    // Predicated region
    $region22: #{tpu_custom_call.1} parent=1 // pred_check
      _
    $region23: #{tpu_custom_call.1} parent=1 // pred_check_branch
      %44 = sbr.rel (0) target = $region25
    $region24: #{tpu_custom_call.1} parent=1 // pred_region
      %45 = dma.done [#allocation3], 8192
    $region25: #{tpu_custom_call.1} parent=1 // pred_fallthru
      _
    // Predicated region
    $region26: #{tpu_custom_call.1} parent=1 // pred_check
      _
    $region27: #{tpu_custom_call.1} parent=1 // pred_check_branch
      %47 = sbr.rel (0) target = $region29
    $region28: #{tpu_custom_call.1} parent=1 // pred_region
      %48 = dma.done [#allocation6], 2048
    $region29: #{tpu_custom_call.1} parent=1 // pred_fallthru
      _
    %v49 = vld [vmem:[%s0] sm:$0xff]
    %v50 = vlaneseq
    %v51 = vand.u32 %v50, 127
    loop: start=0, step=1, limit=4
    $region30: #{tpu_custom_call.1} parent=1 // loop_pre_header
      _
    $region31: #{tpu_custom_call.1} parent=1 // loop_header
      %s53 = sphi 0, %s57
      %p54 = scmp.ge.s32.totalorder %s53, 4
      %v58 = vphi 0.0, %v205
    $region32: #{tpu_custom_call.1} parent=1 // loop_header_branch
      %56 = sbr.rel (%p54) target = $region36
    $region33: #{tpu_custom_call.1} parent=1 // loop_body
      %s59 = smul.u32 %s53, 128
      %s60 = scalar_lea.vmem [#allocation2], %s59
      %v61 = vld [vmem:[%s60] sm:$0xff]
      %v62 = vld [vmem:[%s60 + $0x8] sm:$0xff]
      %v63 = vld [vmem:[%s60 + $0x10] sm:$0xff]
      %v64 = vld [vmem:[%s60 + $0x18] sm:$0xff]
      %v65 = vld [vmem:[%s60 + $0x20] sm:$0xff]
      %v66 = vld [vmem:[%s60 + $0x28] sm:$0xff]
      %v67 = vld [vmem:[%s60 + $0x30] sm:$0xff]
      %v68 = vld [vmem:[%s60 + $0x38] sm:$0xff]
      %v69 = vld [vmem:[%s60 + $0x40] sm:$0xff]
      %v70 = vld [vmem:[%s60 + $0x48] sm:$0xff]
      %v71 = vld [vmem:[%s60 + $0x50] sm:$0xff]
      %v72 = vld [vmem:[%s60 + $0x58] sm:$0xff]
      %v73 = vld [vmem:[%s60 + $0x60] sm:$0xff]
      %v74 = vld [vmem:[%s60 + $0x68] sm:$0xff]
      %v75 = vld [vmem:[%s60 + $0x70] sm:$0xff]
      %v76 = vld [vmem:[%s60 + $0x78] sm:$0xff]
      %v77 = vstv %s59
      %v78 = vsub.s32 %v49, %v77
      %79 = vset.pattern.permute.xlu0 0
      %80 = vperm.xlu0 %79, %v78
      %v81 = vpop.permute.xlu0 %80
      %vm82 = vcmp.eq.s32.totalorder %v81, %v51
      %v83 = vsel %vm82, 1, 0
      %v84 = vcvt.s32.f32 %v83
      %v85 = vadd.f32 %v84, 0.0
      %86 = vset.pattern.permute.xlu0 1
      %87 = vperm.xlu0 %86, %v78
      %v88 = vpop.permute.xlu0 %87
      %vm89 = vcmp.eq.s32.totalorder %v88, %v51
      %v90 = vsel %vm89, 1, 0
      %v91 = vcvt.s32.f32 %v90
      %v92 = vadd.f32 %v85, %v91
      %93 = vset.pattern.permute.xlu0 2
      %94 = vperm.xlu0 %93, %v78
      %v95 = vpop.permute.xlu0 %94
      %vm96 = vcmp.eq.s32.totalorder %v95, %v51
      %v97 = vsel %vm96, 1, 0
      %v98 = vcvt.s32.f32 %v97
      %v99 = vadd.f32 %v92, %v98
      %100 = vset.pattern.permute.xlu0 3
      %101 = vperm.xlu0 %100, %v78
      %v102 = vpop.permute.xlu0 %101
      %vm103 = vcmp.eq.s32.totalorder %v102, %v51
      %v104 = vsel %vm103, 1, 0
      %v105 = vcvt.s32.f32 %v104
      %v106 = vadd.f32 %v99, %v105
      %107 = vset.pattern.permute.xlu0 4
      %108 = vperm.xlu0 %107, %v78
      %v109 = vpop.permute.xlu0 %108
      %vm110 = vcmp.eq.s32.totalorder %v109, %v51
      %v111 = vsel %vm110, 1, 0
      %v112 = vcvt.s32.f32 %v111
      %v113 = vadd.f32 %v106, %v112
      %114 = vset.pattern.permute.xlu0 5
      %115 = vperm.xlu0 %114, %v78
      %v116 = vpop.permute.xlu0 %115
      %vm117 = vcmp.eq.s32.totalorder %v116, %v51
      %v118 = vsel %vm117, 1, 0
      %v119 = vcvt.s32.f32 %v118
      %v120 = vadd.f32 %v113, %v119
      %121 = vset.pattern.permute.xlu0 6
      %122 = vperm.xlu0 %121, %v78
      %v123 = vpop.permute.xlu0 %122
      %vm124 = vcmp.eq.s32.totalorder %v123, %v51
      %v125 = vsel %vm124, 1, 0
      %v126 = vcvt.s32.f32 %v125
      %v127 = vadd.f32 %v120, %v126
      %128 = vset.pattern.permute.xlu0 7
      %129 = vperm.xlu0 %128, %v78
      %v130 = vpop.permute.xlu0 %129
      %vm131 = vcmp.eq.s32.totalorder %v130, %v51
      %v132 = vsel %vm131, 1, 0
      %v133 = vcvt.s32.f32 %v132
      %v134 = vadd.f32 %v127, %v133
      %135 = vmatprep.subr.mxu0 0.0
      %136 = vmatpush1.msra.mxu0 %v61
      %137 = vmatprep.subr.mxu0 0.0
      %138 = vmatpush1.msra.mxu0 %v62
      %139 = vmatprep.subr.mxu0 0.0
      %140 = vmatpush1.msra.mxu0 %v63
      %141 = vmatprep.subr.mxu0 0.0
      %142 = vmatpush1.msra.mxu0 %v64
      %143 = vmatprep.subr.mxu0 0.0
      %144 = vmatpush1.msra.mxu0 %v65
      %145 = vmatprep.subr.mxu0 0.0
      %146 = vmatpush1.msra.mxu0 %v66
      %147 = vmatprep.subr.mxu0 0.0
      %148 = vmatpush1.msra.mxu0 %v67
      %149 = vmatprep.subr.mxu0 0.0
      %150 = vmatpush1.msra.mxu0 %v68
      %151 = vmatprep.subr.mxu0 0.0
      %152 = vmatpush1.msra.mxu0 %v69
      %153 = vmatprep.subr.mxu0 0.0
      %154 = vmatpush1.msra.mxu0 %v70
      %155 = vmatprep.subr.mxu0 0.0
      %156 = vmatpush1.msra.mxu0 %v71
      %157 = vmatprep.subr.mxu0 0.0
      %158 = vmatpush1.msra.mxu0 %v72
      %159 = vmatprep.subr.mxu0 0.0
      %160 = vmatpush1.msra.mxu0 %v73
      %161 = vmatprep.subr.mxu0 0.0
      %162 = vmatpush1.msra.mxu0 %v74
      %163 = vmatprep.subr.mxu0 0.0
      %164 = vmatpush1.msra.mxu0 %v75
      %165 = vmatprep.subr.mxu0 0.0
      %166 = vmatpush1.msra.mxu0 %v76
      %167 = vmatprep.subr.mxu0 0.0
      %168 = vmatpush1.msra.mxu0 0.0
      %169 = vmatprep.subr.mxu0 0.0
      %170 = vmatpush1.msra.mxu0 0.0
      %171 = vmatprep.subr.mxu0 0.0
      %172 = vmatpush1.msra.mxu0 0.0
      %173 = vmatprep.subr.mxu0 0.0
      %174 = vmatpush1.msra.mxu0 0.0
      %175 = vmatprep.subr.mxu0 0.0
      %176 = vmatpush1.msra.mxu0 0.0
      %177 = vmatprep.subr.mxu0 0.0
      %178 = vmatpush1.msra.mxu0 0.0
      %179 = vmatprep.subr.mxu0 0.0
      %180 = vmatpush1.msra.mxu0 0.0
      %181 = vmatprep.subr.mxu0 0.0
      %182 = vmatpush1.msra.mxu0 0.0
      %183 = vmatprep.subr.mxu0 0.0
      %184 = vmatpush1.msra.mxu0 0.0
      %185 = vmatprep.subr.mxu0 0.0
      %186 = vmatpush1.msra.mxu0 0.0
      %187 = vmatprep.subr.mxu0 0.0
      %188 = vmatpush1.msra.mxu0 0.0
      %189 = vmatprep.subr.mxu0 0.0
      %190 = vmatpush1.msra.mxu0 0.0
      %191 = vmatprep.subr.mxu0 0.0
      %192 = vmatpush1.msra.mxu0 0.0
      %193 = vmatprep.subr.mxu0 0.0
      %194 = vmatpush1.msra.mxu0 0.0
      %195 = vmatprep.subr.mxu0 0.0
      %196 = vmatpush1.msra.mxu0 0.0
      %197 = vmatprep.subr.mxu0 0.0
      %198 = vmatpush1.msra.mxu0 0.0
      %199 = vmatprep.mubr.f32.mxu0 0.0
      %200 = vmatmul.mubr.f32.gmra.mrb[0].mxu0 %v134
      %v201 = vpop.f32.mrb[0].mxu0
      %v202 = vadd.f32 0.0, %v201
      %v203 = vpop.f32.mrb[0].mxu0
      %204 = vdwg.mxu0
      %v205 = vadd.f32 %v58, %v202
    $region34: #{tpu_custom_call.1} parent=1 // loop_footer
      %s57 = sadd.s32 1, %s53
    $region35: #{tpu_custom_call.1} parent=1 // loop_footer_branch
      %52 = sbr.rel target = $region31
    $region36: #{tpu_custom_call.1} parent=1 // loop_exit
      _
    %v206 = vld [vmem:[%s1] sm:$0xff]
    %208 = vset.pattern.permute.xlu0 0
    %209 = vperm.xlu0 %208, %v206
    %v210 = vpop.permute.xlu0 %209
    %v212 = vrcp.pop %v210
    %v213 = vmul.f32 %v58, %v212
    %v214 = vld [vmem:[#allocation5] sm:$0xff]
    %v215 = vld [vmem:[#allocation5 + $0x8] sm:$0xff]
    %v216 = vld [vmem:[#allocation5 + $0x10] sm:$0xff]
    %v217 = vld [vmem:[#allocation5 + $0x18] sm:$0xff]
    %v218 = vld [vmem:[#allocation5 + $0x20] sm:$0xff]
    %v219 = vld [vmem:[#allocation5 + $0x28] sm:$0xff]
    %v220 = vld [vmem:[#allocation5 + $0x30] sm:$0xff]
    %v221 = vld [vmem:[#allocation5 + $0x38] sm:$0xff]
    %v222 = vld [vmem:[#allocation5 + $0x40] sm:$0xff]
    %v223 = vld [vmem:[#allocation5 + $0x48] sm:$0xff]
    %v224 = vld [vmem:[#allocation5 + $0x50] sm:$0xff]
    %v225 = vld [vmem:[#allocation5 + $0x58] sm:$0xff]
    %v226 = vld [vmem:[#allocation5 + $0x60] sm:$0xff]
    %v227 = vld [vmem:[#allocation5 + $0x68] sm:$0xff]
    %v228 = vld [vmem:[#allocation5 + $0x70] sm:$0xff]
    %v229 = vld [vmem:[#allocation5 + $0x78] sm:$0xff]
    %v230 = vld [vmem:[%s4] sm:$0x1]
    %v232 = vlaneseq
    %v233 = vshrl.u32 %v232, 7
    %v234 = vsub.s32 0, %v233
    %v235 = vrot.slane %v230, %v234
    %237 = vmatprep.subr.mxu0 0.0
    %238 = vmatpush1.msra.mxu0 %v214
    %239 = vmatprep.subr.mxu0 0.0
    %240 = vmatpush1.msra.mxu0 %v215
    %241 = vmatprep.subr.mxu0 0.0
    %242 = vmatpush1.msra.mxu0 %v216
    %243 = vmatprep.subr.mxu0 0.0
    %244 = vmatpush1.msra.mxu0 %v217
    %245 = vmatprep.subr.mxu0 0.0
    %246 = vmatpush1.msra.mxu0 %v218
    %247 = vmatprep.subr.mxu0 0.0
    %248 = vmatpush1.msra.mxu0 %v219
    %249 = vmatprep.subr.mxu0 0.0
    %250 = vmatpush1.msra.mxu0 %v220
    %251 = vmatprep.subr.mxu0 0.0
    %252 = vmatpush1.msra.mxu0 %v221
    %253 = vmatprep.subr.mxu0 0.0
    %254 = vmatpush1.msra.mxu0 %v222
    %255 = vmatprep.subr.mxu0 0.0
    %256 = vmatpush1.msra.mxu0 %v223
    %257 = vmatprep.subr.mxu0 0.0
    %258 = vmatpush1.msra.mxu0 %v224
    %259 = vmatprep.subr.mxu0 0.0
    %260 = vmatpush1.msra.mxu0 %v225
    %261 = vmatprep.subr.mxu0 0.0
    %262 = vmatpush1.msra.mxu0 %v226
    %263 = vmatprep.subr.mxu0 0.0
    %264 = vmatpush1.msra.mxu0 %v227
    %265 = vmatprep.subr.mxu0 0.0
    %266 = vmatpush1.msra.mxu0 %v228
    %267 = vmatprep.subr.mxu0 0.0
    %268 = vmatpush1.msra.mxu0 %v229
    %269 = vmatprep.subr.mxu0 0.0
    %270 = vmatpush1.msra.mxu0 0.0
    %271 = vmatprep.subr.mxu0 0.0
    %272 = vmatpush1.msra.mxu0 0.0
    %273 = vmatprep.subr.mxu0 0.0
    %274 = vmatpush1.msra.mxu0 0.0
    %275 = vmatprep.subr.mxu0 0.0
    %276 = vmatpush1.msra.mxu0 0.0
    %277 = vmatprep.subr.mxu0 0.0
    %278 = vmatpush1.msra.mxu0 0.0
    %279 = vmatprep.subr.mxu0 0.0
    %280 = vmatpush1.msra.mxu0 0.0
    %281 = vmatprep.subr.mxu0 0.0
    %282 = vmatpush1.msra.mxu0 0.0
    %283 = vmatprep.subr.mxu0 0.0
    %284 = vmatpush1.msra.mxu0 0.0
    %285 = vmatprep.subr.mxu0 0.0
    %286 = vmatpush1.msra.mxu0 0.0
    %287 = vmatprep.subr.mxu0 0.0
    %288 = vmatpush1.msra.mxu0 0.0
    %289 = vmatprep.subr.mxu0 0.0
    %290 = vmatpush1.msra.mxu0 0.0
    %291 = vmatprep.subr.mxu0 0.0
    %292 = vmatpush1.msra.mxu0 0.0
    %293 = vmatprep.subr.mxu0 0.0
    %294 = vmatpush1.msra.mxu0 0.0
    %295 = vmatprep.subr.mxu0 0.0
    %296 = vmatpush1.msra.mxu0 0.0
    %297 = vmatprep.subr.mxu0 0.0
    %298 = vmatpush1.msra.mxu0 0.0
    %299 = vmatprep.subr.mxu0 0.0
    %300 = vmatpush1.msra.mxu0 0.0
    %301 = vmatprep.mubr.f32.mxu0 0.0
    %302 = vmatmul.mubr.f32.gmra.mrb[0].mxu0 %v213
    %v303 = vpop.f32.mrb[0].mxu0
    %v304 = vadd.f32 %v235, %v303
    %v305 = vpop.f32.mrb[0].mxu0
    %306 = vdwg.mxu0
    %v307 = vxor.u32 %v304, 2147483648
    %v308 = vmul.f32 %v307, 1.442695
    %v309 = vpow.pop %v308
    %v310 = vadd.f32 %v309, 1.0
    %v311 = vrcp.pop %v310
    %v312 = vmul.f32 1.0, %v311
    %313 = vst [vmem:[#allocation7] sm:$0xff] %v312
    // Predicated region
    $region37: #{tpu_custom_call.1} parent=1 // pred_check
      _
    $region38: #{tpu_custom_call.1} parent=1 // pred_check_branch
      %315 = sbr.rel (0) target = $region40
    $region39: #{tpu_custom_call.1} parent=1 // pred_region
      %s317 = ssub.s32 128, 128
      %318 = vsyncadd [#allocation4], %s317
      %s320 = sshll.u32 [#allocation7], 4
      %s321 = int_to_ptr.vmem [resolvable:$true] %s320
      %323 = dma.vmem_to_hbm [thread:$0]  %s321, 128, %s5, [#allocation4]
    $region40: #{tpu_custom_call.1} parent=1 // pred_fallthru
      _
    // Predicated region
    $region41: #{tpu_custom_call.1} parent=1 // pred_check
      _
    $region42: #{tpu_custom_call.1} parent=1 // pred_check_branch
      %325 = sbr.rel (0) target = $region44
    $region43: #{tpu_custom_call.1} parent=1 // pred_region
      %326 = dma.done [#allocation4], 128
    $region44: #{tpu_custom_call.1} parent=1 // pred_fallthru
      _
    %327 = vsyncpa [#allocation3], 1
    %328 = vsyncpa [#allocation6], 1
    %329 = vsyncpa [#allocation4], 1

</llo_original>
